<compile_context>
chip_gen: v7x
topology: tpu7x:2x2x1
jax: 0.10.0
libtpu: 0.0.40
codegen_flags: <defaults>
</compile_context>

<pallas_src>
import functools

import jax
import jax.numpy as jnp
from jax.experimental import pallas as pl
from jax.experimental.pallas import tpu as pltpu

LANE = 128
SUBLANE = 8

# f32 keeps results bit-close (<<1e-3) to the f32 PyTorch reference.  At
# realistic node counts flip to jnp.bfloat16 for native-MXU feeding (then relax
# the test tolerance to ~2e-2); accumulation stays f32 via preferred_element_type.
MATMUL_DTYPE = jnp.float32


def _round_up(x, m):
    return (x + m - 1) // m * m


# ----------------------------- Pallas kernel ------------------------------ #

def _gnnq_branch_kernel(g_ref, x_ref, w1_ref, b1_ref, w23_ref, b23_ref, out_ref):
    """One AE branch per grid step (axis 0 = branch: 0 drug, 1 dis).

    gc1 is reassociated to (g @ x0) @ W1 since feat (=n) << 256; the hidden
    activation z lives only in VMEM/vregs.  gc2/gc3 are fused into one matmul
    pair producing the packed [h | logstd | 0] slab -> single lane-dense store.
    """
    g = g_ref[...]
    gx = jnp.dot(g, x_ref[...], preferred_element_type=jnp.float32)
    z = jnp.dot(gx.astype(MATMUL_DTYPE), w1_ref[...],
                preferred_element_type=jnp.float32) + b1_ref[...]
    z = jnp.maximum(z, 0.0)
    # TODO(synk): F.dropout(z, args.dropout) is identity in eval mode.
    zw = jnp.dot(z.astype(MATMUL_DTYPE), w23_ref[...],
                 preferred_element_type=jnp.float32)
    hs = jnp.dot(g, zw.astype(MATMUL_DTYPE),
                 preferred_element_type=jnp.float32) + b23_ref[...]
    out_ref[...] = hs.astype(out_ref.dtype)   # one unmasked 128-wide store
    # TODO(synk): at large n the fused z-resident design must become two-pass
    # (row-tiled grid with z staged via HBM) to fit v7x's 64 MiB VMEM.


# ------------------------------ packing ------------------------------------ #

def pack_gnnq(params, g_drug, g_dis, hidden):
    """Stack both AE branches into leading-size-2, zero-padded operand slabs.

    Zero-padded g rows/cols make the padded output rows pure bias junk that
    never leaks into real rows; gc2/gc3 heads are packed column-wise and padded
    to a 128-lane multiple so the kernel's output store is lane-dense.
    """
    n_pad = _round_up(max(g_drug.shape[0], g_dis.shape[0]), SUBLANE)
    feat_pad = _round_up(max(params["drug"]["w1"].shape[0],
                             params["dis"]["w1"].shape[0]), SUBLANE)
    hid_mid = params["drug"]["w1"].shape[1]
    out_w = _round_up(2 * hidden, LANE)

    def pad2(a, r, c):
        return jnp.pad(a, ((0, r - a.shape[0]), (0, c - a.shape[1])))

    def branch(p, g):
        w23 = jnp.concatenate([p["w2"], p["w3"]], axis=1)       # (hid_mid, 2*hidden)
        b23 = jnp.concatenate([p["b2"], p["b3"]], axis=0)       # (2*hidden,)
        return {
            "g": pad2(g, n_pad, n_pad).astype(MATMUL_DTYPE),
            "w1": pad2(p["w1"], feat_pad, hid_mid).astype(MATMUL_DTYPE),
            "b1": p["b1"].reshape(1, hid_mid).astype(jnp.float32),
            "w23": pad2(w23, hid_mid, out_w).astype(MATMUL_DTYPE),
            "b23": jnp.pad(b23, (0, out_w - 2 * hidden)).reshape(1, out_w)
                     .astype(jnp.float32),
        }

    bd = branch(params["drug"], g_drug)
    bs = branch(params["dis"], g_dis)
    stacked = {k: jnp.stack([bd[k], bs[k]]) for k in bd}
    meta = {"n_pad": n_pad, "feat_pad": feat_pad,
            "hid_mid": hid_mid, "out_w": out_w}
    return stacked, meta


# ------------------------------ wrapper ------------------------------------ #

def gnnq_forward(stacked, x_drug0, x_dis0, *, n_drug, n_dis, feat_pad, hidden):
    """GNNq.forward -> (h_drug, std_drug, x_drug, h_dis, std_dis, x_dis)."""
    n_pad = stacked["g"].shape[1]
    hid_mid = stacked["w1"].shape[2]
    out_w = stacked["w23"].shape[2]

    xd = jnp.pad(x_drug0, ((0, n_pad - x_drug0.shape[0]),
                           (0, feat_pad - x_drug0.shape[1])))
    xs = jnp.pad(x_dis0, ((0, n_pad - x_dis0.shape[0]),
                          (0, feat_pad - x_dis0.shape[1])))
    x0 = jnp.stack([xd, xs]).astype(stacked["g"].dtype)

    def spec(r, c):
        return pl.BlockSpec((pl.Squeezed(), r, c), lambda b: (b, 0, 0))

    flops = 2 * 2 * (n_pad * n_pad * feat_pad        # g @ x0
                     + n_pad * feat_pad * hid_mid    # (g x0) @ W1
                     + n_pad * hid_mid * out_w       # z @ [W2|W3]
                     + n_pad * n_pad * out_w)        # g @ (z W23)
    bytes_accessed = sum(int(a.size) * a.dtype.itemsize for a in
                         (stacked["g"], x0, stacked["w1"], stacked["b1"],
                          stacked["w23"], stacked["b23"])) \
        + 2 * n_pad * out_w * 4

    out = pl.pallas_call(
        _gnnq_branch_kernel,
        out_shape=jax.ShapeDtypeStruct((2, n_pad, out_w), jnp.float32),
        grid=(2,),
        in_specs=[
            spec(n_pad, n_pad),        # g
            spec(n_pad, feat_pad),     # x0
            spec(feat_pad, hid_mid),   # W1
            spec(1, hid_mid),          # b1
            spec(hid_mid, out_w),      # [W2|W3|0]
            spec(1, out_w),            # [b2|b3|0]
        ],
        out_specs=spec(n_pad, out_w),
        compiler_params=pltpu.CompilerParams(
            dimension_semantics=("parallel",)),     # 2-TC split on v7x
        cost_estimate=pl.CostEstimate(
            flops=flops, transcendentals=0, bytes_accessed=bytes_accessed),
    )(stacked["g"], x0, stacked["w1"], stacked["b1"],
      stacked["w23"], stacked["b23"])

    # Slices stay fused inside the jit; consumers wanting zero extra HLOs can
    # take the packed (2, n_pad, 128) slab directly with column offsets.
    h_drug = out[0, :n_drug, :hidden]
    std_drug = out[0, :n_drug, hidden:2 * hidden]
    h_dis = out[1, :n_dis, :hidden]
    std_dis = out[1, :n_dis, hidden:2 * hidden]
    # AE.reparameterize(mu, logstd) returns mu when not training (eval mode).
    return h_drug, std_drug, h_drug, h_dis, std_dis, h_dis


# ------------------------------ init & reference ---------------------------- #

def init_ae_params(key, dim_in, dim_hid, dim_out):
    """AE(dim_in, dim_hid, dim_out): gc1, gc2 (mean), gc3 (log-std)."""
    ks = jax.random.split(key, 6)

    def glorot(k, fi, fo):
        s = (6.0 / (fi + fo)) ** 0.5
        return jax.random.uniform(k, (fi, fo), jnp.float32, -s, s)

    return {
        "w1": glorot(ks[0], dim_in, dim_hid),
        "b1": jax.random.uniform(ks[1], (dim_hid,), jnp.float32, -0.1, 0.1),
        "w2": glorot(ks[2], dim_hid, dim_out),
        "b2": jax.random.uniform(ks[3], (dim_out,), jnp.float32, -0.1, 0.1),
        "w3": glorot(ks[4], dim_hid, dim_out),
        "b3": jax.random.uniform(ks[5], (dim_out,), jnp.float32, -0.1, 0.1),
    }


def gnnq_reference(params, g_drug, g_dis, x_drug0, x_dis0):
    def ae(p, g, x0):
        z = jnp.maximum(g @ (x0 @ p["w1"]) + p["b1"], 0.0)
        h = g @ (z @ p["w2"]) + p["b2"]
        std = g @ (z @ p["w3"]) + p["b3"]
        return h, std, h                      # eval: x = reparameterize(h, std) = h

    hd, sd, xd = ae(params["drug"], g_drug, x_drug0)
    hs, ss, xs = ae(params["dis"], g_dis, x_dis0)
    return hd, sd, xd, hs, ss, xs


def _norm_adj(key, n):
    """Symmetric normalized adjacency with self-loops (typical GCN g)."""
    a = (jax.random.uniform(key, (n, n)) > 0.7).astype(jnp.float32)
    a = jnp.maximum(a, a.T) + jnp.eye(n, dtype=jnp.float32)
    d = jnp.sum(a, axis=1)
    dinv = 1.0 / jnp.sqrt(d)
    return a * dinv[:, None] * dinv[None, :]


# --------------------------------- main ------------------------------------- #

if __name__ == "__main__":
    # drug_sim: (n_drug, n_drug), dis_sim: (n_dis, n_dis)
    n_drug, n_dis = 16, 24
    hid_mid, hidden = 256, 32            # AE(feat, 256, args.hidden)

    root = jax.random.PRNGKey(0)
    k_gd, k_gs, k_xd, k_xs, k_pd, k_ps = jax.random.split(root, 6)

    g_drug = _norm_adj(k_gd, n_drug)                                   # (16, 16)
    g_dis = _norm_adj(k_gs, n_dis)                                     # (24, 24)
    x_drug0 = jax.random.uniform(k_xd, (n_drug, n_drug), jnp.float32)  # feat = drug_sim.shape[1]
    x_dis0 = jax.random.uniform(k_xs, (n_dis, n_dis), jnp.float32)     # feat = dis_sim.shape[0]

    params = {
        "drug": init_ae_params(k_pd, n_drug, hid_mid, hidden),
        "dis": init_ae_params(k_ps, n_dis, hid_mid, hidden),
    }
    stacked, meta = pack_gnnq(params, g_drug, g_dis, hidden)

    fwd = jax.jit(functools.partial(
        gnnq_forward, n_drug=n_drug, n_dis=n_dis,
        feat_pad=meta["feat_pad"], hidden=hidden))
    outs = jax.block_until_ready(fwd(stacked, x_drug0, x_dis0))

    refs = gnnq_reference(params, g_drug, g_dis, x_drug0, x_dis0)
    tol = 1e-3 if MATMUL_DTYPE == jnp.float32 else 2e-2   # bf16 MXU feeding shifts fp
    for o, r in zip(outs, refs):
        assert o.shape == r.shape and o.dtype == r.dtype
        assert jnp.allclose(o, r, atol=tol, rtol=tol)

    assert outs[0].shape == (n_drug, hidden)   # h_drug
    assert outs[1].shape == (n_drug, hidden)   # std_drug (log-std head)
    assert outs[2].shape == (n_drug, hidden)   # x_drug
    assert outs[3].shape == (n_dis, hidden)    # h_dis
    assert outs[4].shape == (n_dis, hidden)    # std_dis (log-std head)
    assert outs[5].shape == (n_dis, hidden)    # x_dis

    print("KERNEL_OK")
</pallas_src>

<mosaic_0001>
module attributes {stable_mosaic.version = 11 : i64} {
  func.func @_gnnq_branch_kernel(%arg0: i32, %arg1: memref<1x24x24xf32, #tpu.memory_space<vmem>>, %arg2: memref<1x24x24xf32, #tpu.memory_space<vmem>>, %arg3: memref<1x24x256xf32, #tpu.memory_space<vmem>>, %arg4: memref<1x1x256xf32, #tpu.memory_space<vmem>>, %arg5: memref<1x256x128xf32, #tpu.memory_space<vmem>>, %arg6: memref<1x1x128xf32, #tpu.memory_space<vmem>>, %arg7: memref<1x24x128xf32, #tpu.memory_space<vmem>>) attributes {dimension_semantics = [#tpu.dimension_semantics<parallel>], iteration_bounds = array<i64: 2>, scalar_prefetch = 0 : i64, scratch_operands = 0 : i64, tpu.core_type = #tpu.core_type<tc>, window_params = [{transform_indices = @transform_0, window_bounds = array<i64: 1, 24, 24>}, {transform_indices = @transform_1, window_bounds = array<i64: 1, 24, 24>}, {transform_indices = @transform_2, window_bounds = array<i64: 1, 24, 256>}, {transform_indices = @transform_3, window_bounds = array<i64: 1, 1, 256>}, {transform_indices = @transform_4, window_bounds = array<i64: 1, 256, 128>}, {transform_indices = @transform_5, window_bounds = array<i64: 1, 1, 128>}, {transform_indices = @transform_6, window_bounds = array<i64: 1, 24, 128>}]} {
    %c0 = arith.constant 0 : index
    %c0_0 = arith.constant 0 : index
    %c0_1 = arith.constant 0 : index
    %0 = vector.load %arg1[%c0, %c0_0, %c0_1] : memref<1x24x24xf32, #tpu.memory_space<vmem>>, vector<1x24x24xf32>
    %1 = vector.shape_cast %0 : vector<1x24x24xf32> to vector<24x24xf32>
    %c0_2 = arith.constant 0 : index
    %c0_3 = arith.constant 0 : index
    %c0_4 = arith.constant 0 : index
    %2 = vector.load %arg2[%c0_2, %c0_3, %c0_4] : memref<1x24x24xf32, #tpu.memory_space<vmem>>, vector<1x24x24xf32>
    %3 = vector.shape_cast %2 : vector<1x24x24xf32> to vector<24x24xf32>
    %cst = arith.constant dense<0.000000e+00> : vector<24x24xf32>
    %4 = tpu.matmul %1, %3, %cst {dimension_numbers = #tpu.dot_dimension_numbers<[1], [0], [0], [1], [0, 0, 1, 1], [], []>} : vector<24x24xf32>, vector<24x24xf32>, vector<24x24xf32> -> vector<24x24xf32>
    %c0_5 = arith.constant 0 : index
    %c0_6 = arith.constant 0 : index
    %c0_7 = arith.constant 0 : index
    %5 = vector.load %arg3[%c0_5, %c0_6, %c0_7] : memref<1x24x256xf32, #tpu.memory_space<vmem>>, vector<1x24x256xf32>
    %6 = vector.shape_cast %5 : vector<1x24x256xf32> to vector<24x256xf32>
    %cst_8 = arith.constant dense<0.000000e+00> : vector<24x256xf32>
    %7 = tpu.matmul %4, %6, %cst_8 {dimension_numbers = #tpu.dot_dimension_numbers<[1], [0], [0], [1], [0, 0, 1, 1], [], []>} : vector<24x24xf32>, vector<24x256xf32>, vector<24x256xf32> -> vector<24x256xf32>
    %c0_9 = arith.constant 0 : index
    %c0_10 = arith.constant 0 : index
    %c0_11 = arith.constant 0 : index
    %8 = vector.load %arg4[%c0_9, %c0_10, %c0_11] : memref<1x1x256xf32, #tpu.memory_space<vmem>>, vector<1x1x256xf32>
    %9 = vector.shape_cast %8 : vector<1x1x256xf32> to vector<1x256xf32>
    %10 = vector.broadcast %9 : vector<1x256xf32> to vector<24x256xf32>
    %11 = arith.addf %7, %10 : vector<24x256xf32>
    %cst_12 = arith.constant 0.000000e+00 : f32
    %12 = vector.broadcast %cst_12 : f32 to vector<24x256xf32>
    %13 = arith.maximumf %11, %12 : vector<24x256xf32>
    %c0_13 = arith.constant 0 : index
    %c0_14 = arith.constant 0 : index
    %c0_15 = arith.constant 0 : index
    %14 = vector.load %arg5[%c0_13, %c0_14, %c0_15] : memref<1x256x128xf32, #tpu.memory_space<vmem>>, vector<1x256x128xf32>
    %15 = vector.shape_cast %14 : vector<1x256x128xf32> to vector<256x128xf32>
    %cst_16 = arith.constant dense<0.000000e+00> : vector<24x128xf32>
    %16 = tpu.matmul %13, %15, %cst_16 {dimension_numbers = #tpu.dot_dimension_numbers<[1], [0], [0], [1], [0, 0, 1, 1], [], []>} : vector<24x256xf32>, vector<256x128xf32>, vector<24x128xf32> -> vector<24x128xf32>
    %cst_17 = arith.constant dense<0.000000e+00> : vector<24x128xf32>
    %17 = tpu.matmul %1, %16, %cst_17 {dimension_numbers = #tpu.dot_dimension_numbers<[1], [0], [0], [1], [0, 0, 1, 1], [], []>} : vector<24x24xf32>, vector<24x128xf32>, vector<24x128xf32> -> vector<24x128xf32>
    %c0_18 = arith.constant 0 : index
    %c0_19 = arith.constant 0 : index
    %c0_20 = arith.constant 0 : index
    %18 = vector.load %arg6[%c0_18, %c0_19, %c0_20] : memref<1x1x128xf32, #tpu.memory_space<vmem>>, vector<1x1x128xf32>
    %19 = vector.shape_cast %18 : vector<1x1x128xf32> to vector<1x128xf32>
    %20 = vector.broadcast %19 : vector<1x128xf32> to vector<24x128xf32>
    %21 = arith.addf %17, %20 : vector<24x128xf32>
    %c0_21 = arith.constant 0 : index
    %c0_22 = arith.constant 0 : index
    %c0_23 = arith.constant 0 : index
    %22 = vector.load %arg7[%c0_21, %c0_22, %c0_23] : memref<1x24x128xf32, #tpu.memory_space<vmem>>, vector<1x24x128xf32>
    %23 = vector.shape_cast %22 : vector<1x24x128xf32> to vector<24x128xf32>
    %24 = vector.shape_cast %21 : vector<24x128xf32> to vector<1x24x128xf32>
    tpu.vector_store %arg7[%c0_21, %c0_22, %c0_23], %24 {strides = array<i32>} : memref<1x24x128xf32, #tpu.memory_space<vmem>>, vector<1x24x128xf32>,
    return
  }
  func.func @transform_0(%arg0: i32) -> (i32, i32, i32) {
    %c0_i32 = arith.constant 0 : i32
    %c0_i32_0 = arith.constant 0 : i32
    %c0_i32_1 = arith.constant 0 : i32
    return %arg0, %c0_i32, %c0_i32_0 : i32, i32, i32
  }
  func.func @transform_1(%arg0: i32) -> (i32, i32, i32) {
    %c0_i32 = arith.constant 0 : i32
    %c0_i32_0 = arith.constant 0 : i32
    %c0_i32_1 = arith.constant 0 : i32
    return %arg0, %c0_i32, %c0_i32_0 : i32, i32, i32
  }
  func.func @transform_2(%arg0: i32) -> (i32, i32, i32) {
    %c0_i32 = arith.constant 0 : i32
    %c0_i32_0 = arith.constant 0 : i32
    %c0_i32_1 = arith.constant 0 : i32
    return %arg0, %c0_i32, %c0_i32_0 : i32, i32, i32
  }
  func.func @transform_3(%arg0: i32) -> (i32, i32, i32) {
    %c0_i32 = arith.constant 0 : i32
    %c0_i32_0 = arith.constant 0 : i32
    %c0_i32_1 = arith.constant 0 : i32
    return %arg0, %c0_i32, %c0_i32_0 : i32, i32, i32
  }
  func.func @transform_4(%arg0: i32) -> (i32, i32, i32) {
    %c0_i32 = arith.constant 0 : i32
    %c0_i32_0 = arith.constant 0 : i32
    %c0_i32_1 = arith.constant 0 : i32
    return %arg0, %c0_i32, %c0_i32_0 : i32, i32, i32
  }
  func.func @transform_5(%arg0: i32) -> (i32, i32, i32) {
    %c0_i32 = arith.constant 0 : i32
    %c0_i32_0 = arith.constant 0 : i32
    %c0_i32_1 = arith.constant 0 : i32
    return %arg0, %c0_i32, %c0_i32_0 : i32, i32, i32
  }
  func.func @transform_6(%arg0: i32) -> (i32, i32, i32) {
    %c0_i32 = arith.constant 0 : i32
    %c0_i32_0 = arith.constant 0 : i32
    %c0_i32_1 = arith.constant 0 : i32
    return %arg0, %c0_i32, %c0_i32_0 : i32, i32, i32
  }
}

</mosaic_0001>

<llo_original>
// kernel: gnnq_forward.1
$region0: #{gnnq_forward.1}
  #allocation0 [shape = 'u32[]', space=smem, size = 0x4, offset = 0x4, fixed_abs, tag = 'smem constant byte address 0x4 - core index']
  #allocation1 [shape = 'u32[144,128]{1,0:T(1,128)}', space=vmem, size = 0x12000, scoped, tag = 'internal scratch']
  %s0 = inlined_call_operand.vmem [shape: f32[2,24,24], index: 0, kind: input, shape index: {}]
  %s1 = inlined_call_operand.vmem [shape: f32[2,24,24], index: 1, kind: input, shape index: {}]
  %s2 = inlined_call_operand.vmem [shape: f32[2,24,256], index: 2, kind: input, shape index: {}]
  %s3 = inlined_call_operand.vmem [shape: f32[2,1,256], index: 3, kind: input, shape index: {}]
  %s4 = inlined_call_operand.hbm [shape: f32[2,256,128], index: 4, kind: input, shape index: {}]
  %s5 = inlined_call_operand.vmem [shape: f32[2,1,128], index: 5, kind: input, shape index: {}]
  %s6 = inlined_call_operand.vmem [shape: f32[2,24,128], index: 6, kind: output, shape index: {}]
  %s7 = sld [smem:[#allocation0]]
  $region61: #{gnnq_forward.1} parent=0
    _
  %s9 = ssub.s32 1, %s7
  %s10 = scalar_select 0, %s9, %s7
  $region1: #{gnnq_forward.1} parent=0
    #allocation2 [shape = 'u8[262144]{0}', space=vmem, size = 0x40000, scoped, tag = 'input window, operand 4']
    #allocation3 [shape = 's32[2]{0}', space=sflag, size = 0x8, scoped, tag = 'scoped memory for gnnq_forward.1']
    %11 = vsyncpa [#allocation3], 0
    %s12 = scalar_lea.sflag [#allocation3], 1
    %13 = vsyncpa %s12, 0
    loop: start=0, step=1, limit=4
    $region2: #{gnnq_forward.1} parent=1 // loop_pre_header
      _
    $region3: #{gnnq_forward.1} parent=1 // loop_header
      %s15 = sphi 0, %s19
      %p16 = scmp.ge.s32.totalorder %s15, 4
      %s25 = sphi 0, %s27
      %s28 = sphi 0, %s25
      %s29 = sphi 0, %s28
      %s45 = sphi 0, %s29
      %s51 = sphi 0, %s53
      %s54 = sphi 0, %s51
      %s55 = sphi 0, %s54
      %s71 = sphi 0, %s55
      %s77 = sphi 0, %s79
      %s80 = sphi 0, %s77
      %s81 = sphi 0, %s80
      %s97 = sphi 0, %s81
      %s103 = sphi 0, %s105
      %s106 = sphi 0, %s103
      %s107 = sphi 0, %s106
      %s123 = sphi 0, %s107
      %s129 = sphi 0, %s131
      %s132 = sphi 0, %s129
      %s133 = sphi 0, %s132
      %s149 = sphi 0, %s133
      %s155 = sphi 0, %s157
      %s158 = sphi 0, %s155
      %s159 = sphi 0, %s158
      %s175 = sphi 0, %s159
      %s181 = sphi 0, %s183
      %s184 = sphi 0, %s181
      %s185 = sphi 0, %s184
      %s201 = sphi 0, %s185
    $region4: #{gnnq_forward.1} parent=1 // loop_header_branch
      %18 = sbr.rel (%p16) target = $region8
    $region5: #{gnnq_forward.1} parent=1 // loop_body
      %s20 = ssub.s32 %s15, 1
      %s21 = ssub.s32 %s15, 2
      %s22 = sadd.s32 %s15, 1
      %s23 = ssub.s32 %s15, %s22
      %p24 = scmp.eq.s32.totalorder %s23, 0
      %s26 = sadd.s32 %s25, 1
      %s27 = scalar_select %p24, %s25, %s26
      %p30 = pneg %p24
      %p31 = scmp.eq.s32.totalorder %s15, 1
      %p32 = por %p30, %p31
      %p33 = scmp.ne.s32.totalorder %s25, %s28
      %p34 = scmp.eq.s32.totalorder %s15, 0
      %p35 = por %p33, %p34
      %p36 = scmp.ne.s32.totalorder %s25, %s28
      %p37 = scmp.eq.s32.totalorder %s20, 1
      %p38 = por %p36, %p37
      %p39 = scmp.ne.s32.totalorder %s28, %s29
      %p40 = scmp.eq.s32.totalorder %s20, 0
      %p41 = por %p39, %p40
      %p42 = scmp.ne.s32.totalorder %s28, %s29
      %p43 = scmp.eq.s32.totalorder %s21, 1
      %p44 = por %p42, %p43
      %p46 = scmp.ne.s32.totalorder %s29, %s45
      %p47 = scmp.eq.s32.totalorder %s21, 0
      %p48 = por %p46, %p47
      %s49 = ssub.s32 %s15, %s22
      %p50 = scmp.eq.s32.totalorder %s49, 0
      %s52 = sadd.s32 %s51, 1
      %s53 = scalar_select %p50, %s51, %s52
      %p56 = pneg %p50
      %p57 = scmp.eq.s32.totalorder %s15, 1
      %p58 = por %p56, %p57
      %p59 = scmp.ne.s32.totalorder %s51, %s54
      %p60 = scmp.eq.s32.totalorder %s15, 0
      %p61 = por %p59, %p60
      %p62 = scmp.ne.s32.totalorder %s51, %s54
      %p63 = scmp.eq.s32.totalorder %s20, 1
      %p64 = por %p62, %p63
      %p65 = scmp.ne.s32.totalorder %s54, %s55
      %p66 = scmp.eq.s32.totalorder %s20, 0
      %p67 = por %p65, %p66
      %p68 = scmp.ne.s32.totalorder %s54, %s55
      %p69 = scmp.eq.s32.totalorder %s21, 1
      %p70 = por %p68, %p69
      %p72 = scmp.ne.s32.totalorder %s55, %s71
      %p73 = scmp.eq.s32.totalorder %s21, 0
      %p74 = por %p72, %p73
      %s75 = ssub.s32 %s15, %s22
      %p76 = scmp.eq.s32.totalorder %s75, 0
      %s78 = sadd.s32 %s77, 1
      %s79 = scalar_select %p76, %s77, %s78
      %p82 = pneg %p76
      %p83 = scmp.eq.s32.totalorder %s15, 1
      %p84 = por %p82, %p83
      %p85 = scmp.ne.s32.totalorder %s77, %s80
      %p86 = scmp.eq.s32.totalorder %s15, 0
      %p87 = por %p85, %p86
      %p88 = scmp.ne.s32.totalorder %s77, %s80
      %p89 = scmp.eq.s32.totalorder %s20, 1
      %p90 = por %p88, %p89
      %p91 = scmp.ne.s32.totalorder %s80, %s81
      %p92 = scmp.eq.s32.totalorder %s20, 0
      %p93 = por %p91, %p92
      %p94 = scmp.ne.s32.totalorder %s80, %s81
      %p95 = scmp.eq.s32.totalorder %s21, 1
      %p96 = por %p94, %p95
      %p98 = scmp.ne.s32.totalorder %s81, %s97
      %p99 = scmp.eq.s32.totalorder %s21, 0
      %p100 = por %p98, %p99
      %s101 = ssub.s32 %s15, %s22
      %p102 = scmp.eq.s32.totalorder %s101, 0
      %s104 = sadd.s32 %s103, 1
      %s105 = scalar_select %p102, %s103, %s104
      %p108 = pneg %p102
      %p109 = scmp.eq.s32.totalorder %s15, 1
      %p110 = por %p108, %p109
      %p111 = scmp.ne.s32.totalorder %s103, %s106
      %p112 = scmp.eq.s32.totalorder %s15, 0
      %p113 = por %p111, %p112
      %p114 = scmp.ne.s32.totalorder %s103, %s106
      %p115 = scmp.eq.s32.totalorder %s20, 1
      %p116 = por %p114, %p115
      %p117 = scmp.ne.s32.totalorder %s106, %s107
      %p118 = scmp.eq.s32.totalorder %s20, 0
      %p119 = por %p117, %p118
      %p120 = scmp.ne.s32.totalorder %s106, %s107
      %p121 = scmp.eq.s32.totalorder %s21, 1
      %p122 = por %p120, %p121
      %p124 = scmp.ne.s32.totalorder %s107, %s123
      %p125 = scmp.eq.s32.totalorder %s21, 0
      %p126 = por %p124, %p125
      %s127 = ssub.s32 %s15, %s22
      %p128 = scmp.eq.s32.totalorder %s127, 0
      %s130 = sadd.s32 %s129, 1
      %s131 = scalar_select %p128, %s129, %s130
      %p134 = pneg %p128
      %p135 = scmp.eq.s32.totalorder %s15, 1
      %p136 = por %p134, %p135
      %p137 = scmp.ne.s32.totalorder %s129, %s132
      %p138 = scmp.eq.s32.totalorder %s15, 0
      %p139 = por %p137, %p138
      %p140 = scmp.ne.s32.totalorder %s129, %s132
      %p141 = scmp.eq.s32.totalorder %s20, 1
      %p142 = por %p140, %p141
      %p143 = scmp.ne.s32.totalorder %s132, %s133
      %p144 = scmp.eq.s32.totalorder %s20, 0
      %p145 = por %p143, %p144
      %p146 = scmp.ne.s32.totalorder %s132, %s133
      %p147 = scmp.eq.s32.totalorder %s21, 1
      %p148 = por %p146, %p147
      %p150 = scmp.ne.s32.totalorder %s133, %s149
      %p151 = scmp.eq.s32.totalorder %s21, 0
      %p152 = por %p150, %p151
      %s153 = ssub.s32 %s15, %s22
      %p154 = scmp.eq.s32.totalorder %s153, 0
      %s156 = sadd.s32 %s155, 1
      %s157 = scalar_select %p154, %s155, %s156
      %p160 = pneg %p154
      %p161 = scmp.eq.s32.totalorder %s15, 1
      %p162 = por %p160, %p161
      %p163 = scmp.ne.s32.totalorder %s155, %s158
      %p164 = scmp.eq.s32.totalorder %s15, 0
      %p165 = por %p163, %p164
      %p166 = scmp.ne.s32.totalorder %s155, %s158
      %p167 = scmp.eq.s32.totalorder %s20, 1
      %p168 = por %p166, %p167
      %p169 = scmp.ne.s32.totalorder %s158, %s159
      %p170 = scmp.eq.s32.totalorder %s20, 0
      %p171 = por %p169, %p170
      %p172 = scmp.ne.s32.totalorder %s158, %s159
      %p173 = scmp.eq.s32.totalorder %s21, 1
      %p174 = por %p172, %p173
      %p176 = scmp.ne.s32.totalorder %s159, %s175
      %p177 = scmp.eq.s32.totalorder %s21, 0
      %p178 = por %p176, %p177
      %s179 = ssub.s32 %s15, %s22
      %p180 = scmp.eq.s32.totalorder %s179, 0
      %s182 = sadd.s32 %s181, 1
      %s183 = scalar_select %p180, %s181, %s182
      %p186 = pneg %p180
      %p187 = scmp.eq.s32.totalorder %s15, 1
      %p188 = por %p186, %p187
      %p189 = scmp.ne.s32.totalorder %s181, %s184
      %p190 = scmp.eq.s32.totalorder %s15, 0
      %p191 = por %p189, %p190
      %p192 = scmp.ne.s32.totalorder %s181, %s184
      %p193 = scmp.eq.s32.totalorder %s20, 1
      %p194 = por %p192, %p193
      %p195 = scmp.ne.s32.totalorder %s184, %s185
      %p196 = scmp.eq.s32.totalorder %s20, 0
      %p197 = por %p195, %p196
      %p198 = scmp.ne.s32.totalorder %s184, %s185
      %p199 = scmp.eq.s32.totalorder %s21, 1
      %p200 = por %p198, %p199
      %p202 = scmp.ne.s32.totalorder %s185, %s201
      %p203 = scmp.eq.s32.totalorder %s21, 0
      %p204 = por %p202, %p203
      %p205 = scmp.le.s32.totalorder 1, %s15
      %p206 = scmp.lt.s32.totalorder %s15, 3
      %p207 = pnand %p205, %p206
      %p208 = pneg %p207
      // Predicated region
      $region9: #{gnnq_forward.1} parent=5 // pred_check
        _
      $region10: #{gnnq_forward.1} parent=5 // pred_check_branch
        %210 = sbr.rel (%p207) target = $region12
      $region11: #{gnnq_forward.1} parent=5 // pred_region
        %s211 = ssub.s32 %s15, 1
      $region12: #{gnnq_forward.1} parent=5 // pred_fallthru
        _
      %p212 = scmp.lt.s32.totalorder %s15, 2
      // Predicated region
      $region13: #{gnnq_forward.1} parent=5 // pred_check
        %p213 = pneg %p212
      $region14: #{gnnq_forward.1} parent=5 // pred_check_branch
        %215 = sbr.rel (%p213) target = $region16
      $region15: #{gnnq_forward.1} parent=5 // pred_region
        // Predicated region
        $region17: #{gnnq_forward.1} parent=15 // pred_check
          %p216 = pneg %p35
        $region18: #{gnnq_forward.1} parent=15 // pred_check_branch
          %218 = sbr.rel (%p216) target = $region20
        $region19: #{gnnq_forward.1} parent=15 // pred_region
          %p219 = scmp.lt.s32.totalorder %s15, 1
          %s220 = scalar_select %p219, %s15, 1
          %s221 = smul.addr %s220, 3
          %s222 = smul.addr %s221, 8
          %s223 = scalar_lea.vmem %s0, %s222
        $region20: #{gnnq_forward.1} parent=15 // pred_fallthru
          _
        // Predicated region
        $region21: #{gnnq_forward.1} parent=15 // pred_check
          %p224 = pneg %p61
        $region22: #{gnnq_forward.1} parent=15 // pred_check_branch
          %226 = sbr.rel (%p224) target = $region24
        $region23: #{gnnq_forward.1} parent=15 // pred_region
          %p227 = scmp.lt.s32.totalorder %s15, 1
          %s228 = scalar_select %p227, %s15, 1
          %s229 = smul.addr %s228, 3
          %s230 = smul.addr %s229, 8
          %s231 = scalar_lea.vmem %s1, %s230
        $region24: #{gnnq_forward.1} parent=15 // pred_fallthru
          _
        // Predicated region
        $region25: #{gnnq_forward.1} parent=15 // pred_check
          %p232 = pneg %p87
        $region26: #{gnnq_forward.1} parent=15 // pred_check_branch
          %234 = sbr.rel (%p232) target = $region28
        $region27: #{gnnq_forward.1} parent=15 // pred_region
          %p235 = scmp.lt.s32.totalorder %s15, 1
          %s236 = scalar_select %p235, %s15, 1
          %s237 = smul.addr %s236, 6
          %s238 = smul.addr %s237, 8
          %s239 = scalar_lea.vmem %s2, %s238
        $region28: #{gnnq_forward.1} parent=15 // pred_fallthru
          _
        // Predicated region
        $region29: #{gnnq_forward.1} parent=15 // pred_check
          %p240 = pneg %p113
        $region30: #{gnnq_forward.1} parent=15 // pred_check_branch
          %242 = sbr.rel (%p240) target = $region32
        $region31: #{gnnq_forward.1} parent=15 // pred_region
          %p243 = scmp.lt.s32.totalorder %s15, 1
          %s244 = scalar_select %p243, %s15, 1
          %s245 = smul.addr %s244, 2
          %s246 = scalar_lea.vmem %s3, %s245
        $region32: #{gnnq_forward.1} parent=15 // pred_fallthru
          _
        // Predicated region
        $region33: #{gnnq_forward.1} parent=15 // pred_check
          %p247 = pneg %p139
        $region34: #{gnnq_forward.1} parent=15 // pred_check_branch
          %249 = sbr.rel (%p247) target = $region36
        $region35: #{gnnq_forward.1} parent=15 // pred_region
          %s250 = sand.u32 %s129, 1
          %s251 = scalar_lea.sflag [#allocation3], %s250
          %s252 = sand.u32 %s129, 1
          %s253 = smul.addr %s252, 256
          %s254 = scalar_lea.vmem [#allocation2], %s253
          %s256 = ssub.s32 4096, 4096
          %257 = vsyncadd %s251, %s256
          %s258 = smul.addr %s15, 32
          %s259 = smul.addr %s258, 128
          %s260 = scalar_lea.hbm %s4, %s259
          %s261 = sshll.u32 %s254, 4
          %s262 = int_to_ptr.vmem [resolvable:$true] %s261
          %267 = dma.hbm_to_vmem [thread:$0]  %s260, 4096, %s262, %s251, 128, 128, 8
        $region36: #{gnnq_forward.1} parent=15 // pred_fallthru
          _
        // Predicated region
        $region37: #{gnnq_forward.1} parent=15 // pred_check
          %p268 = pneg %p165
        $region38: #{gnnq_forward.1} parent=15 // pred_check_branch
          %270 = sbr.rel (%p268) target = $region40
        $region39: #{gnnq_forward.1} parent=15 // pred_region
          %p271 = scmp.lt.s32.totalorder %s15, 1
          %s272 = scalar_select %p271, %s15, 1
          %s273 = scalar_lea.vmem %s5, %s272
        $region40: #{gnnq_forward.1} parent=15 // pred_fallthru
          _
      $region16: #{gnnq_forward.1} parent=5 // pred_fallthru
        _
      %p274 = scmp.le.s32.totalorder 1, %s15
      %p275 = scmp.lt.s32.totalorder %s15, 3
      %p276 = pnand %p274, %p275
      %p277 = pneg %p276
      // Predicated region
      $region41: #{gnnq_forward.1} parent=5 // pred_check
        _
      $region42: #{gnnq_forward.1} parent=5 // pred_check_branch
        %279 = sbr.rel (%p276) target = $region44
      $region43: #{gnnq_forward.1} parent=5 // pred_region
        %s280 = ssub.s32 %s15, 1
        %s281 = sand.u32 %s132, 1
        %s282 = scalar_lea.sflag [#allocation3], %s281
        %s283 = sand.u32 %s132, 1
        %s284 = smul.addr %s283, 256
        %s285 = scalar_lea.vmem [#allocation2], %s284
        // Predicated region
        $region45: #{gnnq_forward.1} parent=43 // pred_check
          %p286 = pneg %p145
        $region46: #{gnnq_forward.1} parent=43 // pred_check_branch
          %288 = sbr.rel (%p286) target = $region48
        $region47: #{gnnq_forward.1} parent=43 // pred_region
          %289 = dma.done %s282, 4096
        $region48: #{gnnq_forward.1} parent=43 // pred_fallthru
          _
        %p290 = scmp.lt.s32.totalorder %s20, 1
        %s291 = scalar_select %p290, %s20, 1
        %s292 = smul.addr %s291, 3
        %s293 = smul.addr %s292, 8
        %s294 = scalar_lea.vmem %s0, %s293
        %p295 = pneg %p41
        %p296 = pneg %p38
        %p297 = scmp.lt.s32.totalorder %s20, 1
        %s298 = scalar_select %p297, %s20, 1
        %s299 = smul.addr %s298, 3
        %s300 = smul.addr %s299, 8
        %s301 = scalar_lea.vmem %s1, %s300
        %p302 = pneg %p67
        %p303 = pneg %p64
        %p304 = scmp.lt.s32.totalorder %s20, 1
        %s305 = scalar_select %p304, %s20, 1
        %s306 = smul.addr %s305, 6
        %s307 = smul.addr %s306, 8
        %s308 = scalar_lea.vmem %s2, %s307
        %p309 = pneg %p93
        %p310 = pneg %p90
        %p311 = scmp.lt.s32.totalorder %s20, 1
        %s312 = scalar_select %p311, %s20, 1
        %s313 = smul.addr %s312, 2
        %s314 = scalar_lea.vmem %s3, %s313
        %p315 = pneg %p119
        %p316 = pneg %p116
        %s317 = sand.u32 %s132, 1
        %s318 = scalar_lea.sflag [#allocation3], %s317
        %s319 = sand.u32 %s132, 1
        %s320 = smul.addr %s319, 256
        %s321 = scalar_lea.vmem [#allocation2], %s320
        %p322 = pneg %p145
        %p323 = pneg %p142
        %p324 = scmp.lt.s32.totalorder %s20, 1
        %s325 = scalar_select %p324, %s20, 1
        %s326 = scalar_lea.vmem %s5, %s325
        %p327 = pneg %p171
        %p328 = pneg %p168
        %p329 = pneg %p197
        %p330 = pneg %p194
        %p331 = scmp.lt.s32.totalorder %s20, 1
        %s332 = scalar_select %p331, %s20, 1
        %s333 = smul.addr %s332, 3
        %s334 = smul.addr %s333, 8
        %s335 = scalar_lea.vmem %s6, %s334
        %p336 = scmp.lt.s32.totalorder %s20, 1
        %s337 = scalar_select %p336, %s20, 1
        %s338 = smul.addr %s337, 3
        %s339 = smul.addr %s338, 8
        %s340 = scalar_lea.vmem %s0, %s339
        %p341 = scmp.lt.s32.totalorder %s20, 1
        %s342 = scalar_select %p341, %s20, 1
        %s343 = smul.addr %s342, 3
        %s344 = smul.addr %s343, 8
        %s345 = scalar_lea.vmem %s1, %s344
        %p346 = scmp.lt.s32.totalorder %s20, 1
        %s347 = scalar_select %p346, %s20, 1
        %s348 = smul.addr %s347, 6
        %s349 = smul.addr %s348, 8
        %s350 = scalar_lea.vmem %s2, %s349
        %p351 = scmp.lt.s32.totalorder %s20, 1
        %s352 = scalar_select %p351, %s20, 1
        %s353 = smul.addr %s352, 2
        %s354 = scalar_lea.vmem %s3, %s353
        %p355 = scmp.lt.s32.totalorder %s20, 1
        %s356 = scalar_select %p355, %s20, 1
        %s357 = scalar_lea.vmem %s5, %s356
        %p358 = scmp.lt.s32.totalorder %s20, 1
        %s359 = scalar_select %p358, %s20, 1
        %s360 = smul.addr %s359, 3
        %s361 = smul.addr %s360, 8
        %s362 = scalar_lea.vmem %s6, %s361
        %v363 = vld [vmem:[%s340] sm:$0xff]
        %v364 = vld [vmem:[%s340 + $0x8] sm:$0xff]
        %v365 = vld [vmem:[%s340 + $0x10] sm:$0xff]
        %v366 = vld [vmem:[%s345] sm:$0xff]
        %v367 = vld [vmem:[%s345 + $0x8] sm:$0xff]
        %v368 = vld [vmem:[%s345 + $0x10] sm:$0xff]
        %vm369 = vcmask 195584
        %v371 = vsel %vm369, %v363, 0
        %v374 = vsel %vm369, %v364, 0
        %v377 = vsel %vm369, %v365, 0
        %379 = vmatprep.subr.mxu0 0.0
        %380 = vmatpush1.msra.mxu0 %v366
        %381 = vmatprep.subr.mxu0 0.0
        %382 = vmatpush1.msra.mxu0 %v367
        %383 = vmatprep.subr.mxu0 0.0
        %384 = vmatpush1.msra.mxu0 %v368
        %385 = vmatprep.subr.mxu0 0.0
        %386 = vmatpush1.msra.mxu0 0.0
        %387 = vmatprep.subr.mxu0 0.0
        %388 = vmatpush1.msra.mxu0 0.0
        %389 = vmatprep.subr.mxu0 0.0
        %390 = vmatpush1.msra.mxu0 0.0
        %391 = vmatprep.subr.mxu0 0.0
        %392 = vmatpush1.msra.mxu0 0.0
        %393 = vmatprep.subr.mxu0 0.0
        %394 = vmatpush1.msra.mxu0 0.0
        %395 = vmatprep.subr.mxu0 0.0
        %396 = vmatpush1.msra.mxu0 0.0
        %397 = vmatprep.subr.mxu0 0.0
        %398 = vmatpush1.msra.mxu0 0.0
        %399 = vmatprep.subr.mxu0 0.0
        %400 = vmatpush1.msra.mxu0 0.0
        %401 = vmatprep.subr.mxu0 0.0
        %402 = vmatpush1.msra.mxu0 0.0
        %403 = vmatprep.subr.mxu0 0.0
        %404 = vmatpush1.msra.mxu0 0.0
        %405 = vmatprep.subr.mxu0 0.0
        %406 = vmatpush1.msra.mxu0 0.0
        %407 = vmatprep.subr.mxu0 0.0
        %408 = vmatpush1.msra.mxu0 0.0
        %409 = vmatprep.subr.mxu0 0.0
        %410 = vmatpush1.msra.mxu0 0.0
        %411 = vmatprep.subr.mxu0 0.0
        %412 = vmatpush1.msra.mxu0 0.0
        %413 = vmatprep.subr.mxu0 0.0
        %414 = vmatpush1.msra.mxu0 0.0
        %415 = vmatprep.subr.mxu0 0.0
        %416 = vmatpush1.msra.mxu0 0.0
        %417 = vmatprep.subr.mxu0 0.0
        %418 = vmatpush1.msra.mxu0 0.0
        %419 = vmatprep.subr.mxu0 0.0
        %420 = vmatpush1.msra.mxu0 0.0
        %421 = vmatprep.subr.mxu0 0.0
        %422 = vmatpush1.msra.mxu0 0.0
        %423 = vmatprep.subr.mxu0 0.0
        %424 = vmatpush1.msra.mxu0 0.0
        %425 = vmatprep.subr.mxu0 0.0
        %426 = vmatpush1.msra.mxu0 0.0
        %427 = vmatprep.subr.mxu0 0.0
        %428 = vmatpush1.msra.mxu0 0.0
        %429 = vmatprep.subr.mxu0 0.0
        %430 = vmatpush1.msra.mxu0 0.0
        %431 = vmatprep.subr.mxu0 0.0
        %432 = vmatpush1.msra.mxu0 0.0
        %433 = vmatprep.subr.mxu0 0.0
        %434 = vmatpush1.msra.mxu0 0.0
        %435 = vmatprep.subr.mxu0 0.0
        %436 = vmatpush1.msra.mxu0 0.0
        %437 = vmatprep.subr.mxu0 0.0
        %438 = vmatpush1.msra.mxu0 0.0
        %439 = vmatprep.subr.mxu0 0.0
        %440 = vmatpush1.msra.mxu0 0.0
        %441 = vmatprep.subr.mxu0 0.0
        %442 = vmatpush1.msra.mxu0 0.0
        %443 = vmatprep.mubr.f32.mxu0 0.0
        %444 = vmatmul.mubr.f32.gmra.mrb[0].mxu0 %v371
        %v445 = vpop.f32.mrb[0].mxu0
        %v446 = vadd.f32 0.0, %v445
        %v447 = vpop.f32.mrb[0].mxu0
        %448 = vmatprep.mubr.f32.mxu0 0.0
        %449 = vmatmul.mubr.f32.gmra.mrb[0].mxu0 %v374
        %v450 = vpop.f32.mrb[0].mxu0
        %v451 = vadd.f32 0.0, %v450
        %v452 = vpop.f32.mrb[0].mxu0
        %453 = vmatprep.mubr.f32.mxu0 0.0
        %454 = vmatmul.mubr.f32.gmra.mrb[0].mxu0 %v377
        %v455 = vpop.f32.mrb[0].mxu0
        %v456 = vadd.f32 0.0, %v455
        %v457 = vpop.f32.mrb[0].mxu0
        %458 = vdwg.mxu0
        %v459 = vld [vmem:[%s350] sm:$0xff]
        %v460 = vld [vmem:[%s350 + $0x8] sm:$0xff]
        %v461 = vld [vmem:[%s350 + $0x10] sm:$0xff]
        %v462 = vld [vmem:[%s350 + $0x18] sm:$0xff]
        %v463 = vld [vmem:[%s350 + $0x20] sm:$0xff]
        %v464 = vld [vmem:[%s350 + $0x28] sm:$0xff]
        %v465 = vld [vmem:[%s354] sm:$0x3]
        %v467 = vlaneseq
        %v468 = vshrl.u32 %v467, 7
        %v469 = vsub.s32 0, %v468
        %v470 = vrot.slane %v465, %v469
        %v471 = vlaneseq
        %v472 = vshrl.u32 %v471, 7
        %v473 = vsub.s32 1, %v472
        %v474 = vrot.slane %v465, %v473
        %v478 = vsel %vm369, %v446, 0
        %v481 = vsel %vm369, %v451, 0
        %v484 = vsel %vm369, %v456, 0
        %486 = vmatprep.subr.mxu0 %v460
        %487 = vmatpush1.msra.mxu0 %v459
        %488 = vmatprep.subr.mxu0 %v462
        %489 = vmatpush1.msra.mxu0 %v461
        %490 = vmatprep.subr.mxu0 %v464
        %491 = vmatpush1.msra.mxu0 %v463
        %492 = vmatprep.subr.mxu0 0.0
        %493 = vmatpush1.msra.mxu0 0.0
        %494 = vmatprep.subr.mxu0 0.0
        %495 = vmatpush1.msra.mxu0 0.0
        %496 = vmatprep.subr.mxu0 0.0
        %497 = vmatpush1.msra.mxu0 0.0
        %498 = vmatprep.subr.mxu0 0.0
        %499 = vmatpush1.msra.mxu0 0.0
        %500 = vmatprep.subr.mxu0 0.0
        %501 = vmatpush1.msra.mxu0 0.0
        %502 = vmatprep.subr.mxu0 0.0
        %503 = vmatpush1.msra.mxu0 0.0
        %504 = vmatprep.subr.mxu0 0.0
        %505 = vmatpush1.msra.mxu0 0.0
        %506 = vmatprep.subr.mxu0 0.0
        %507 = vmatpush1.msra.mxu0 0.0
        %508 = vmatprep.subr.mxu0 0.0
        %509 = vmatpush1.msra.mxu0 0.0
        %510 = vmatprep.subr.mxu0 0.0
        %511 = vmatpush1.msra.mxu0 0.0
        %512 = vmatprep.subr.mxu0 0.0
        %513 = vmatpush1.msra.mxu0 0.0
        %514 = vmatprep.subr.mxu0 0.0
        %515 = vmatpush1.msra.mxu0 0.0
        %516 = vmatprep.subr.mxu0 0.0
        %517 = vmatpush1.msra.mxu0 0.0
        %518 = vmatprep.subr.mxu0 0.0
        %519 = vmatpush1.msra.mxu0 0.0
        %520 = vmatprep.subr.mxu0 0.0
        %521 = vmatpush1.msra.mxu0 0.0
        %522 = vmatprep.subr.mxu0 0.0
        %523 = vmatpush1.msra.mxu0 0.0
        %524 = vmatprep.subr.mxu0 0.0
        %525 = vmatpush1.msra.mxu0 0.0
        %526 = vmatprep.subr.mxu0 0.0
        %527 = vmatpush1.msra.mxu0 0.0
        %528 = vmatprep.subr.mxu0 0.0
        %529 = vmatpush1.msra.mxu0 0.0
        %530 = vmatprep.subr.mxu0 0.0
        %531 = vmatpush1.msra.mxu0 0.0
        %532 = vmatprep.subr.mxu0 0.0
        %533 = vmatpush1.msra.mxu0 0.0
        %534 = vmatprep.subr.mxu0 0.0
        %535 = vmatpush1.msra.mxu0 0.0
        %536 = vmatprep.subr.mxu0 0.0
        %537 = vmatpush1.msra.mxu0 0.0
        %538 = vmatprep.subr.mxu0 0.0
        %539 = vmatpush1.msra.mxu0 0.0
        %540 = vmatprep.subr.mxu0 0.0
        %541 = vmatpush1.msra.mxu0 0.0
        %542 = vmatprep.subr.mxu0 0.0
        %543 = vmatpush1.msra.mxu0 0.0
        %544 = vmatprep.subr.mxu0 0.0
        %545 = vmatpush1.msra.mxu0 0.0
        %546 = vmatprep.subr.mxu0 0.0
        %547 = vmatpush1.msra.mxu0 0.0
        %548 = vmatprep.subr.mxu0 0.0
        %549 = vmatpush1.msra.mxu0 0.0
        %550 = vmatprep.mubr.f32.mxu0 0.0
        %551 = vmatmul.mubr.f32.gmra.mrb[0].mxu0 %v478
        %v552 = vpop.f32.mrb[0].mxu0
        %v553 = vadd.f32 %v470, %v552
        %v554 = vpop.f32.mrb[0].mxu0
        %v555 = vadd.f32 %v474, %v554
        %556 = vmatprep.mubr.f32.mxu0 0.0
        %557 = vmatmul.mubr.f32.gmra.mrb[0].mxu0 %v481
        %v558 = vpop.f32.mrb[0].mxu0
        %v559 = vadd.f32 %v470, %v558
        %v560 = vpop.f32.mrb[0].mxu0
        %v561 = vadd.f32 %v474, %v560
        %562 = vmatprep.mubr.f32.mxu0 0.0
        %563 = vmatmul.mubr.f32.gmra.mrb[0].mxu0 %v484
        %v564 = vpop.f32.mrb[0].mxu0
        %v565 = vadd.f32 %v470, %v564
        %v566 = vpop.f32.mrb[0].mxu0
        %v567 = vadd.f32 %v474, %v566
        %568 = vdwg.mxu0
        %v569 = vmax.f32 %v553, 0.0
        %v570 = vmax.f32 %v555, 0.0
        %v571 = vmax.f32 %v559, 0.0
        %v572 = vmax.f32 %v561, 0.0
        %v573 = vmax.f32 %v565, 0.0
        %v574 = vmax.f32 %v567, 0.0
        %v575 = vld [vmem:[%s285] sm:$0xff]
        %v576 = vld [vmem:[%s285 + $0x8] sm:$0xff]
        %v577 = vld [vmem:[%s285 + $0x10] sm:$0xff]
        %v578 = vld [vmem:[%s285 + $0x18] sm:$0xff]
        %v579 = vld [vmem:[%s285 + $0x20] sm:$0xff]
        %v580 = vld [vmem:[%s285 + $0x28] sm:$0xff]
        %v581 = vld [vmem:[%s285 + $0x30] sm:$0xff]
        %v582 = vld [vmem:[%s285 + $0x38] sm:$0xff]
        %v583 = vld [vmem:[%s285 + $0x40] sm:$0xff]
        %v584 = vld [vmem:[%s285 + $0x48] sm:$0xff]
        %v585 = vld [vmem:[%s285 + $0x50] sm:$0xff]
        %v586 = vld [vmem:[%s285 + $0x58] sm:$0xff]
        %v587 = vld [vmem:[%s285 + $0x60] sm:$0xff]
        %v588 = vld [vmem:[%s285 + $0x68] sm:$0xff]
        %v589 = vld [vmem:[%s285 + $0x70] sm:$0xff]
        %v590 = vld [vmem:[%s285 + $0x78] sm:$0xff]
        %v591 = vld [vmem:[%s285 + $0x80] sm:$0xff]
        %v592 = vld [vmem:[%s285 + $0x88] sm:$0xff]
        %v593 = vld [vmem:[%s285 + $0x90] sm:$0xff]
        %v594 = vld [vmem:[%s285 + $0x98] sm:$0xff]
        %v595 = vld [vmem:[%s285 + $0xa0] sm:$0xff]
        %v596 = vld [vmem:[%s285 + $0xa8] sm:$0xff]
        %v597 = vld [vmem:[%s285 + $0xb0] sm:$0xff]
        %v598 = vld [vmem:[%s285 + $0xb8] sm:$0xff]
        %v599 = vld [vmem:[%s285 + $0xc0] sm:$0xff]
        %v600 = vld [vmem:[%s285 + $0xc8] sm:$0xff]
        %v601 = vld [vmem:[%s285 + $0xd0] sm:$0xff]
        %v602 = vld [vmem:[%s285 + $0xd8] sm:$0xff]
        %v603 = vld [vmem:[%s285 + $0xe0] sm:$0xff]
        %v604 = vld [vmem:[%s285 + $0xe8] sm:$0xff]
        %v605 = vld [vmem:[%s285 + $0xf0] sm:$0xff]
        %v606 = vld [vmem:[%s285 + $0xf8] sm:$0xff]
        %607 = vmatprep.subr.mxu0 0.0
        %608 = vmatpush1.msra.mxu0 %v575
        %609 = vmatprep.subr.mxu0 0.0
        %610 = vmatpush1.msra.mxu0 %v576
        %611 = vmatprep.subr.mxu0 0.0
        %612 = vmatpush1.msra.mxu0 %v577
        %613 = vmatprep.subr.mxu0 0.0
        %614 = vmatpush1.msra.mxu0 %v578
        %615 = vmatprep.subr.mxu0 0.0
        %616 = vmatpush1.msra.mxu0 %v579
        %617 = vmatprep.subr.mxu0 0.0
        %618 = vmatpush1.msra.mxu0 %v580
        %619 = vmatprep.subr.mxu0 0.0
        %620 = vmatpush1.msra.mxu0 %v581
        %621 = vmatprep.subr.mxu0 0.0
        %622 = vmatpush1.msra.mxu0 %v582
        %623 = vmatprep.subr.mxu0 0.0
        %624 = vmatpush1.msra.mxu0 %v583
        %625 = vmatprep.subr.mxu0 0.0
        %626 = vmatpush1.msra.mxu0 %v584
        %627 = vmatprep.subr.mxu0 0.0
        %628 = vmatpush1.msra.mxu0 %v585
        %629 = vmatprep.subr.mxu0 0.0
        %630 = vmatpush1.msra.mxu0 %v586
        %631 = vmatprep.subr.mxu0 0.0
        %632 = vmatpush1.msra.mxu0 %v587
        %633 = vmatprep.subr.mxu0 0.0
        %634 = vmatpush1.msra.mxu0 %v588
        %635 = vmatprep.subr.mxu0 0.0
        %636 = vmatpush1.msra.mxu0 %v589
        %637 = vmatprep.subr.mxu0 0.0
        %638 = vmatpush1.msra.mxu0 %v590
        %639 = vmatprep.subr.mxu0 0.0
        %640 = vmatpush1.msra.mxu0 %v591
        %641 = vmatprep.subr.mxu0 0.0
        %642 = vmatpush1.msra.mxu0 %v592
        %643 = vmatprep.subr.mxu0 0.0
        %644 = vmatpush1.msra.mxu0 %v593
        %645 = vmatprep.subr.mxu0 0.0
        %646 = vmatpush1.msra.mxu0 %v594
        %647 = vmatprep.subr.mxu0 0.0
        %648 = vmatpush1.msra.mxu0 %v595
        %649 = vmatprep.subr.mxu0 0.0
        %650 = vmatpush1.msra.mxu0 %v596
        %651 = vmatprep.subr.mxu0 0.0
        %652 = vmatpush1.msra.mxu0 %v597
        %653 = vmatprep.subr.mxu0 0.0
        %654 = vmatpush1.msra.mxu0 %v598
        %655 = vmatprep.subr.mxu0 0.0
        %656 = vmatpush1.msra.mxu0 %v599
        %657 = vmatprep.subr.mxu0 0.0
        %658 = vmatpush1.msra.mxu0 %v600
        %659 = vmatprep.subr.mxu0 0.0
        %660 = vmatpush1.msra.mxu0 %v601
        %661 = vmatprep.subr.mxu0 0.0
        %662 = vmatpush1.msra.mxu0 %v602
        %663 = vmatprep.subr.mxu0 0.0
        %664 = vmatpush1.msra.mxu0 %v603
        %665 = vmatprep.subr.mxu0 0.0
        %666 = vmatpush1.msra.mxu0 %v604
        %667 = vmatprep.subr.mxu0 0.0
        %668 = vmatpush1.msra.mxu0 %v605
        %669 = vmatprep.subr.mxu0 0.0
        %670 = vmatpush1.msra.mxu0 %v606
        %671 = vmatprep.mubr.f32.mxu0 %v570
        %672 = vmatmul.mubr.f32.gmra.mrb[0].mxu0 %v569
        %v673 = vpop.f32.mrb[0].mxu0
        %v674 = vadd.f32 0.0, %v673
        %v675 = vpop.f32.mrb[0].mxu0
        %676 = vmatprep.mubr.f32.mxu0 %v572
        %677 = vmatmul.mubr.f32.gmra.mrb[0].mxu0 %v571
        %v678 = vpop.f32.mrb[0].mxu0
        %v679 = vadd.f32 0.0, %v678
        %v680 = vpop.f32.mrb[0].mxu0
        %681 = vmatprep.mubr.f32.mxu0 %v574
        %682 = vmatmul.mubr.f32.gmra.mrb[0].mxu0 %v573
        %v683 = vpop.f32.mrb[0].mxu0
        %v684 = vadd.f32 0.0, %v683
        %v685 = vpop.f32.mrb[0].mxu0
        %686 = vdwg.mxu0
        %v687 = vld [vmem:[%s357] sm:$0x1]
        %v689 = vlaneseq
        %v690 = vshrl.u32 %v689, 7
        %v691 = vsub.s32 0, %v690
        %v692 = vrot.slane %v687, %v691
        %694 = vmatprep.subr.mxu0 0.0
        %695 = vmatpush1.msra.mxu0 %v674
        %696 = vmatprep.subr.mxu0 0.0
        %697 = vmatpush1.msra.mxu0 %v679
        %698 = vmatprep.subr.mxu0 0.0
        %699 = vmatpush1.msra.mxu0 %v684
        %700 = vmatprep.subr.mxu0 0.0
        %701 = vmatpush1.msra.mxu0 0.0
        %702 = vmatprep.subr.mxu0 0.0
        %703 = vmatpush1.msra.mxu0 0.0
        %704 = vmatprep.subr.mxu0 0.0
        %705 = vmatpush1.msra.mxu0 0.0
        %706 = vmatprep.subr.mxu0 0.0
        %707 = vmatpush1.msra.mxu0 0.0
        %708 = vmatprep.subr.mxu0 0.0
        %709 = vmatpush1.msra.mxu0 0.0
        %710 = vmatprep.subr.mxu0 0.0
        %711 = vmatpush1.msra.mxu0 0.0
        %712 = vmatprep.subr.mxu0 0.0
        %713 = vmatpush1.msra.mxu0 0.0
        %714 = vmatprep.subr.mxu0 0.0
        %715 = vmatpush1.msra.mxu0 0.0
        %716 = vmatprep.subr.mxu0 0.0
        %717 = vmatpush1.msra.mxu0 0.0
        %718 = vmatprep.subr.mxu0 0.0
        %719 = vmatpush1.msra.mxu0 0.0
        %720 = vmatprep.subr.mxu0 0.0
        %721 = vmatpush1.msra.mxu0 0.0
        %722 = vmatprep.subr.mxu0 0.0
        %723 = vmatpush1.msra.mxu0 0.0
        %724 = vmatprep.subr.mxu0 0.0
        %725 = vmatpush1.msra.mxu0 0.0
        %726 = vmatprep.subr.mxu0 0.0
        %727 = vmatpush1.msra.mxu0 0.0
        %728 = vmatprep.subr.mxu0 0.0
        %729 = vmatpush1.msra.mxu0 0.0
        %730 = vmatprep.subr.mxu0 0.0
        %731 = vmatpush1.msra.mxu0 0.0
        %732 = vmatprep.subr.mxu0 0.0
        %733 = vmatpush1.msra.mxu0 0.0
        %734 = vmatprep.subr.mxu0 0.0
        %735 = vmatpush1.msra.mxu0 0.0
        %736 = vmatprep.subr.mxu0 0.0
        %737 = vmatpush1.msra.mxu0 0.0
        %738 = vmatprep.subr.mxu0 0.0
        %739 = vmatpush1.msra.mxu0 0.0
        %740 = vmatprep.subr.mxu0 0.0
        %741 = vmatpush1.msra.mxu0 0.0
        %742 = vmatprep.subr.mxu0 0.0
        %743 = vmatpush1.msra.mxu0 0.0
        %744 = vmatprep.subr.mxu0 0.0
        %745 = vmatpush1.msra.mxu0 0.0
        %746 = vmatprep.subr.mxu0 0.0
        %747 = vmatpush1.msra.mxu0 0.0
        %748 = vmatprep.subr.mxu0 0.0
        %749 = vmatpush1.msra.mxu0 0.0
        %750 = vmatprep.subr.mxu0 0.0
        %751 = vmatpush1.msra.mxu0 0.0
        %752 = vmatprep.subr.mxu0 0.0
        %753 = vmatpush1.msra.mxu0 0.0
        %754 = vmatprep.subr.mxu0 0.0
        %755 = vmatpush1.msra.mxu0 0.0
        %756 = vmatprep.subr.mxu0 0.0
        %757 = vmatpush1.msra.mxu0 0.0
        %758 = vmatprep.mubr.f32.mxu0 0.0
        %759 = vmatmul.mubr.f32.gmra.mrb[0].mxu0 %v371
        %v760 = vpop.f32.mrb[0].mxu0
        %v761 = vadd.f32 %v692, %v760
        %v762 = vpop.f32.mrb[0].mxu0
        %763 = vmatprep.mubr.f32.mxu0 0.0
        %764 = vmatmul.mubr.f32.gmra.mrb[0].mxu0 %v374
        %v765 = vpop.f32.mrb[0].mxu0
        %v766 = vadd.f32 %v692, %v765
        %v767 = vpop.f32.mrb[0].mxu0
        %768 = vmatprep.mubr.f32.mxu0 0.0
        %769 = vmatmul.mubr.f32.gmra.mrb[0].mxu0 %v377
        %v770 = vpop.f32.mrb[0].mxu0
        %v771 = vadd.f32 %v692, %v770
        %v772 = vpop.f32.mrb[0].mxu0
        %773 = vdwg.mxu0
        %774 = vst [vmem:[%s362] sm:$0xff] %v761
        %775 = vst [vmem:[%s362 + $0x8] sm:$0xff] %v766
        %776 = vst [vmem:[%s362 + $0x10] sm:$0xff] %v771
        %p777 = scmp.lt.s32.totalorder %s20, 1
        %s778 = scalar_select %p777, %s20, 1
        %s779 = smul.addr %s778, 3
        %s780 = smul.addr %s779, 8
        %s781 = scalar_lea.vmem %s6, %s780
        // Predicated region
        $region49: #{gnnq_forward.1} parent=43 // pred_check
          %p782 = pneg %p194
        $region50: #{gnnq_forward.1} parent=43 // pred_check_branch
          %784 = sbr.rel (%p782) target = $region52
        $region51: #{gnnq_forward.1} parent=43 // pred_region
          _
        $region52: #{gnnq_forward.1} parent=43 // pred_fallthru
          _
      $region44: #{gnnq_forward.1} parent=5 // pred_fallthru
        _
      %p785 = scmp.le.s32.totalorder 2, %s15
      // Predicated region
      $region53: #{gnnq_forward.1} parent=5 // pred_check
        %p786 = pneg %p785
      $region54: #{gnnq_forward.1} parent=5 // pred_check_branch
        %788 = sbr.rel (%p786) target = $region56
      $region55: #{gnnq_forward.1} parent=5 // pred_region
        %s789 = ssub.s32 %s15, 2
        // Predicated region
        $region57: #{gnnq_forward.1} parent=55 // pred_check
          %p790 = pneg %p200
        $region58: #{gnnq_forward.1} parent=55 // pred_check_branch
          %792 = sbr.rel (%p790) target = $region60
        $region59: #{gnnq_forward.1} parent=55 // pred_region
          %p793 = scmp.lt.s32.totalorder %s21, 1
          %s794 = scalar_select %p793, %s21, 1
          %s795 = smul.addr %s794, 3
          %s796 = smul.addr %s795, 8
          %s797 = scalar_lea.vmem %s6, %s796
        $region60: #{gnnq_forward.1} parent=55 // pred_fallthru
          _
      $region56: #{gnnq_forward.1} parent=5 // pred_fallthru
        _
    $region6: #{gnnq_forward.1} parent=1 // loop_footer
      %s19 = sadd.s32 1, %s15
    $region7: #{gnnq_forward.1} parent=1 // loop_footer_branch
      %14 = sbr.rel target = $region3
    $region8: #{gnnq_forward.1} parent=1 // loop_exit
      _
    %798 = vsyncpa [#allocation3], 1
    %s799 = scalar_lea.sflag [#allocation3], 1
    %800 = vsyncpa %s799, 1

</llo_original>
